<compile_context>
chip_gen: v7x
topology: tpu7x:2x2x1
jax: 0.10.0
libtpu: 0.0.40
codegen_flags: <defaults>
</compile_context>

<pallas_src>
import jax
import jax.numpy as jnp
from jax.experimental import pallas as pl
from jax.experimental.pallas import tpu as pltpu


# ---------------------------------------------------------------------------
# Kernels
# ---------------------------------------------------------------------------
def _linear_kernel_fused(x_ref, wt_ref, b_ref, o_ref):
    """Single-K-step case: one MXU matmul + bias, no accumulator scratch."""
    o_ref[...] = (
        jnp.dot(x_ref[...], wt_ref[...], preferred_element_type=jnp.float32)
        + b_ref[...]
    ).astype(o_ref.dtype)


def _linear_kernel_acc(x_ref, wt_ref, b_ref, o_ref, acc_ref):
    """General case: K walked by grid axis 2 ('arbitrary'), f32 accumulator."""
    k = pl.program_id(2)

    @pl.when(k == 0)
    def _():
        acc_ref[...] = jnp.zeros_like(acc_ref)

    acc_ref[...] += jnp.dot(
        x_ref[...], wt_ref[...], preferred_element_type=jnp.float32
    )

    @pl.when(k == pl.num_programs(2) - 1)
    def _():
        o_ref[...] = (acc_ref[...] + b_ref[...]).astype(o_ref.dtype)


# ---------------------------------------------------------------------------
# Tiling heuristics
# ---------------------------------------------------------------------------
def _vmem_budget():
    """(tile budget bytes, vmem_limit_bytes) sized off the actual chip."""
    try:
        cap = pltpu.get_tpu_info().vmem_capacity_bytes
    except Exception:  # pragma: no cover - conservative default (v5e/v6e)
        cap = 128 * 1024 * 1024
    return int(0.40 * cap), int(0.50 * cap)


def _pick_contract_block(dim):
    """Exact divisor of the contraction/output-col axis; prefer 256-aligned
    tiles (v6e/v7x MXU is 2x256x256) before falling back to 128 (v5e)."""
    for c in (512, 256, 128):
        if dim % c == 0:
            return c
    return dim  # full axis (also satisfies the (8,128) block constraint)


def _pick_rows_block(m, bk, bn, itemsize, out_itemsize, budget_bytes, with_acc):
    """Largest row tile whose double-buffered working set fits the budget."""
    # Sub-32-bit dtypes pack along sublanes: keep tiles at full packed vregs.
    min_rows = max(8, 32 // itemsize)
    w_bytes = 2 * bk * bn * itemsize                       # weight tile (x2 bufs)
    bm = min_rows
    for cand in (2048, 1024, 512, 256, 128, 64, 32, 16, 8):
        if cand < min_rows:
            break
        need = (
            2 * cand * bk * itemsize                       # x tile (x2 bufs)
            + w_bytes
            + 2 * cand * bn * out_itemsize                 # out tile (x2 bufs)
            + (cand * bn * 4 if with_acc else 0)           # f32 accumulator
        )
        if need <= budget_bytes:
            bm = cand
            break
    bm = min(bm, m)
    # v7x shards 'parallel' grid axes across its 2 TensorCores: when M is big
    # enough, keep >=2 row blocks so neither core idles.  Tiles stay >=512
    # rows, so this costs nothing on single-TC v5e/v6e.
    if m >= 1024 and bm >= m:
        half = (-(-m // 2) + 7) // 8 * 8                   # ceil(m/2) -> mult of 8
        bm = min(bm, max(512, half))
    return bm


# ---------------------------------------------------------------------------
# Wrapper
# ---------------------------------------------------------------------------
def prepare_generator_params(weight, bias):
    """One-time parameter prep (hoisted out of the per-call path).

    weight: [out_dim, d_model] (torch nn.Linear layout)
    returns (wt=[d_model, out_dim] lane-dense, bias=[1, out_dim] f32).
    """
    wt = jnp.swapaxes(jnp.asarray(weight), 0, 1)           # [K, N]
    b2d = jnp.asarray(bias).astype(jnp.float32).reshape(1, -1)
    return wt, b2d


def generator_forward(x, wt, b2d, *, force_pallas=False):
    """x: [..., d_model]; wt: [d_model, out_dim]; b2d: [1, out_dim] (f32)."""
    orig_shape = x.shape
    k_dim = orig_shape[-1]
    kw, n_dim = wt.shape
    assert kw == k_dim, "d_model mismatch between x and weight"

    out_dtype = x.dtype
    # Promote (never silently downcast f32 weights against bf16 activations).
    compute_dtype = jnp.promote_types(x.dtype, wt.dtype)

    x2d = x.reshape(-1, k_dim).astype(compute_dtype)
    wt = wt.astype(compute_dtype)
    m_dim = x2d.shape[0]

    # Tiny problems: per-grid-step overhead (~600 cyc) + masked stores dominate;
    # XLA's fused dot is faster than any pallas_call here.
    if not force_pallas and m_dim * k_dim * n_dim < (1 << 20):
        out = jnp.dot(x2d, wt, preferred_element_type=jnp.float32) + b2d
        return out.astype(out_dtype).reshape(orig_shape[:-1] + (n_dim,))

    budget_bytes, vmem_limit = _vmem_budget()
    itemsize = jnp.dtype(compute_dtype).itemsize
    out_itemsize = jnp.dtype(out_dtype).itemsize

    bk = _pick_contract_block(k_dim)
    # Keep N un-tiled whenever the weight tile comfortably fits VMEM (always
    # true for a Generator head): x is then streamed exactly once.
    if 2 * bk * n_dim * itemsize <= budget_bytes // 4:
        bn = n_dim
    else:
        bn = _pick_contract_block(n_dim)

    single_k = (k_dim // bk) == 1
    bm = _pick_rows_block(m_dim, bk, bn, itemsize, out_itemsize,
                          budget_bytes, with_acc=not single_k)
    if bm < 256 and bk > 128 and k_dim % 128 == 0:
        # Shrink the contraction tile before the row tile: sub-256-row tiles
        # only reach ~30% of HBM roofline (measured, v5e/v6e tile sweep).
        bk = 128
        single_k = (k_dim // bk) == 1
        bm = _pick_rows_block(m_dim, bk, bn, itemsize, out_itemsize,
                              budget_bytes, with_acc=not single_k)

    # NOTE: if out_dim < 128 in production, output stores are masked vst.msk;
    # fuse multiple projection heads so N >= 128/256 and slice afterwards.

    if single_k:
        grid = (pl.cdiv(m_dim, bm), n_dim // bn)
        in_specs = [
            pl.BlockSpec((bm, bk), lambda i, j: (i, 0)),    # x tile
            pl.BlockSpec((bk, bn), lambda i, j: (0, j)),    # W.T tile
            pl.BlockSpec((1, bn), lambda i, j: (0, j)),     # bias tile
        ]
        out_specs = pl.BlockSpec((bm, bn), lambda i, j: (i, j))
        scratch_shapes = []
        kernel = _linear_kernel_fused
        dims = ("parallel", "parallel")
    else:
        grid = (pl.cdiv(m_dim, bm), n_dim // bn, k_dim // bk)
        in_specs = [
            pl.BlockSpec((bm, bk), lambda i, j, k: (i, k)),
            pl.BlockSpec((bk, bn), lambda i, j, k: (k, j)),
            pl.BlockSpec((1, bn), lambda i, j, k: (0, j)),
        ]
        out_specs = pl.BlockSpec((bm, bn), lambda i, j, k: (i, j))
        scratch_shapes = [pltpu.VMEM((bm, bn), jnp.float32)]
        kernel = _linear_kernel_acc
        dims = ("parallel", "parallel", "arbitrary")

    cost = pl.CostEstimate(
        flops=2 * m_dim * k_dim * n_dim,
        transcendentals=0,
        bytes_accessed=(m_dim * k_dim * itemsize
                        + k_dim * n_dim * itemsize
                        + n_dim * 4
                        + m_dim * n_dim * out_itemsize),
    )

    out = pl.pallas_call(
        kernel,
        out_shape=jax.ShapeDtypeStruct((m_dim, n_dim), out_dtype),
        grid_spec=pltpu.PrefetchScalarGridSpec(
            num_scalar_prefetch=0,
            grid=grid,
            in_specs=in_specs,
            out_specs=out_specs,
            scratch_shapes=scratch_shapes,
        ),
        compiler_params=pltpu.CompilerParams(
            dimension_semantics=dims,
            vmem_limit_bytes=vmem_limit,
        ),
        cost_estimate=cost,
    )(x2d, wt, b2d)

    return out.reshape(orig_shape[:-1] + (n_dim,))


# ---------------------------------------------------------------------------
# Demo / correctness check
# ---------------------------------------------------------------------------
if __name__ == "__main__":
    key = jax.random.PRNGKey(0)
    kx, kw, kb = jax.random.split(key, 3)

    # Generator-style projection head (small but big enough to exercise the
    # Pallas path; out_dim = 128 keeps output stores lane-dense).
    batch, seq, d_model, out_dim = 2, 64, 256, 128

    x = jax.random.normal(kx, (batch, seq, d_model), dtype=jnp.float32)
    # nn.Linear-style parameters: weight [out_dim, d_model], bias [out_dim]
    weight = jax.random.normal(kw, (out_dim, d_model), dtype=jnp.float32) * 0.05
    bias = jax.random.normal(kb, (out_dim,), dtype=jnp.float32) * 0.05

    # Parameter prep is hoisted out of the forward path (done once).
    wt, b2d = prepare_generator_params(weight, bias)

    # Pallas path.
    out = generator_forward(x, wt, b2d, force_pallas=True)
    jax.block_until_ready(out)

    ref = jnp.einsum("bsd,od->bso", x, weight) + bias
    assert out.shape == ref.shape, "shape mismatch vs reference"
    assert jnp.allclose(out, ref, atol=1e-4, rtol=1e-4), "mismatch vs reference"

    # Tiny-shape fallback path (pure XLA dot) stays correct too.
    x_small = jax.random.normal(kx, (2, 8, d_model), dtype=jnp.float32)
    out_small = generator_forward(x_small, wt, b2d)
    jax.block_until_ready(out_small)
    ref_small = jnp.einsum("bsd,od->bso", x_small, weight) + bias
    assert jnp.allclose(out_small, ref_small, atol=1e-4, rtol=1e-4), \
        "fallback mismatch vs reference"

    print("KERNEL_OK")
</pallas_src>

<mosaic_0001>
module attributes {stable_mosaic.version = 11 : i64} {
  func.func @_linear_kernel_acc(%arg0: i32, %arg1: i32, %arg2: i32, %arg3: memref<128x128xf32, #tpu.memory_space<vmem>>, %arg4: memref<128x128xf32, #tpu.memory_space<vmem>>, %arg5: memref<1x128xf32, #tpu.memory_space<vmem>>, %arg6: memref<128x128xf32, #tpu.memory_space<vmem>>, %arg7: memref<128x128xf32, #tpu.memory_space<vmem>>) attributes {dimension_semantics = [#tpu.dimension_semantics<parallel>, #tpu.dimension_semantics<parallel>, #tpu.dimension_semantics<arbitrary>], iteration_bounds = array<i64: 1, 1, 2>, scalar_prefetch = 0 : i64, scratch_operands = 1 : i64, tpu.core_type = #tpu.core_type<tc>, window_params = [{transform_indices = @transform_0, window_bounds = array<i64: 128, 128>}, {transform_indices = @transform_1, window_bounds = array<i64: 128, 128>}, {transform_indices = @transform_2, window_bounds = array<i64: 1, 128>}, {transform_indices = @transform_3, window_bounds = array<i64: 128, 128>}]} {
    %c0_i32 = arith.constant 0 : i32
    %0 = arith.cmpi eq, %arg2, %c0_i32 : i32
    %1 = arith.extui %0 : i1 to i32
    %c0_i32_0 = arith.constant 0 : i32
    %2 = arith.cmpi ne, %1, %c0_i32_0 : i32
    scf.if %2 {
      %cst_9 = arith.constant 0.000000e+00 : f32
      %12 = vector.broadcast %cst_9 : f32 to vector<128x128xf32>
      %c0_10 = arith.constant 0 : index
      %c0_11 = arith.constant 0 : index
      %13 = vector.load %arg7[%c0_10, %c0_11] : memref<128x128xf32, #tpu.memory_space<vmem>>, vector<128x128xf32>
      tpu.vector_store %arg7[%c0_10, %c0_11], %12 {strides = array<i32>} : memref<128x128xf32, #tpu.memory_space<vmem>>, vector<128x128xf32>,
    } else {
    }
    %c0 = arith.constant 0 : index
    %c0_1 = arith.constant 0 : index
    %3 = vector.load %arg7[%c0, %c0_1] : memref<128x128xf32, #tpu.memory_space<vmem>>, vector<128x128xf32>
    %c0_2 = arith.constant 0 : index
    %c0_3 = arith.constant 0 : index
    %4 = vector.load %arg3[%c0_2, %c0_3] : memref<128x128xf32, #tpu.memory_space<vmem>>, vector<128x128xf32>
    %c0_4 = arith.constant 0 : index
    %c0_5 = arith.constant 0 : index
    %5 = vector.load %arg4[%c0_4, %c0_5] : memref<128x128xf32, #tpu.memory_space<vmem>>, vector<128x128xf32>
    %cst = arith.constant dense<0.000000e+00> : vector<128x128xf32>
    %6 = tpu.matmul %4, %5, %cst {dimension_numbers = #tpu.dot_dimension_numbers<[1], [0], [0], [1], [0, 0, 1, 1], [], []>} : vector<128x128xf32>, vector<128x128xf32>, vector<128x128xf32> -> vector<128x128xf32>
    %7 = arith.addf %3, %6 : vector<128x128xf32>
    %c0_6 = arith.constant 0 : index
    %c0_7 = arith.constant 0 : index
    %8 = vector.load %arg7[%c0_6, %c0_7] : memref<128x128xf32, #tpu.memory_space<vmem>>, vector<128x128xf32>
    tpu.vector_store %arg7[%c0_6, %c0_7], %7 {strides = array<i32>} : memref<128x128xf32, #tpu.memory_space<vmem>>, vector<128x128xf32>,
    %c1_i32 = arith.constant 1 : i32
    %9 = arith.cmpi eq, %arg2, %c1_i32 : i32
    %10 = arith.extui %9 : i1 to i32
    %c0_i32_8 = arith.constant 0 : i32
    %11 = arith.cmpi ne, %10, %c0_i32_8 : i32
    scf.if %11 {
      %c0_9 = arith.constant 0 : index
      %c0_10 = arith.constant 0 : index
      %12 = vector.load %arg7[%c0_9, %c0_10] : memref<128x128xf32, #tpu.memory_space<vmem>>, vector<128x128xf32>
      %c0_11 = arith.constant 0 : index
      %c0_12 = arith.constant 0 : index
      %13 = vector.load %arg5[%c0_11, %c0_12] : memref<1x128xf32, #tpu.memory_space<vmem>>, vector<1x128xf32>
      %14 = vector.broadcast %13 : vector<1x128xf32> to vector<128x128xf32>
      %15 = arith.addf %12, %14 : vector<128x128xf32>
      %c0_13 = arith.constant 0 : index
      %c0_14 = arith.constant 0 : index
      %16 = vector.load %arg6[%c0_13, %c0_14] : memref<128x128xf32, #tpu.memory_space<vmem>>, vector<128x128xf32>
      tpu.vector_store %arg6[%c0_13, %c0_14], %15 {strides = array<i32>} : memref<128x128xf32, #tpu.memory_space<vmem>>, vector<128x128xf32>,
    } else {
    }
    return
  }
  func.func @transform_0(%arg0: i32, %arg1: i32, %arg2: i32) -> (i32, i32) {
    %c0_i32 = arith.constant 0 : i32
    return %arg0, %arg2 : i32, i32
  }
  func.func @transform_1(%arg0: i32, %arg1: i32, %arg2: i32) -> (i32, i32) {
    %c0_i32 = arith.constant 0 : i32
    return %arg2, %arg1 : i32, i32
  }
  func.func @transform_2(%arg0: i32, %arg1: i32, %arg2: i32) -> (i32, i32) {
    %c0_i32 = arith.constant 0 : i32
    %c0_i32_0 = arith.constant 0 : i32
    return %c0_i32, %arg1 : i32, i32
  }
  func.func @transform_3(%arg0: i32, %arg1: i32, %arg2: i32) -> (i32, i32) {
    %c0_i32 = arith.constant 0 : i32
    return %arg0, %arg1 : i32, i32
  }
}

</mosaic_0001>

<llo_original>
// kernel: tpu_custom_call.1
$region0: #{tpu_custom_call.1}
  #allocation0 [shape = 'u32[]', space=smem, size = 0x4, offset = 0x4, fixed_abs, tag = 'smem constant byte address 0x4 - core index']
  #allocation1 [shape = 'u32[144,128]{1,0:T(1,128)}', space=vmem, size = 0x12000, scoped, tag = 'internal scratch']
  #allocation2 [shape = 'f32[128,128]{1,0:T(8,128)}', space=vmem, size = 0x10000, scoped, tag = 'scratch operand']
  %s0 = inlined_call_operand.hbm [shape: f32[128,256], index: 0, kind: input, shape index: {}]
  %s1 = inlined_call_operand.hbm [shape: f32[256,128], index: 1, kind: input, shape index: {}]
  %s2 = inlined_call_operand.hbm [shape: f32[1,128], index: 2, kind: input, shape index: {}]
  %s3 = inlined_call_operand.hbm [shape: f32[128,128], index: 3, kind: output, shape index: {}]
  %s4 = sld [smem:[#allocation0]]
  $region65: #{tpu_custom_call.1} parent=0
    _
  %s6 = ssub.s32 1, %s4
  %s7 = scalar_select 0, %s6, %s4
  $region1: #{tpu_custom_call.1} parent=0
    #allocation3 [shape = 'u8[131072]{0}', space=vmem, size = 0x20000, scoped, tag = 'input window, operand 0']
    #allocation4 [shape = 's32[2]{0}', space=sflag, size = 0x8, scoped, tag = 'scoped memory for tpu_custom_call.1']
    #allocation5 [shape = 's32[2]{0}', space=sflag, size = 0x8, scoped, tag = 'scoped memory for tpu_custom_call.1']
    #allocation6 [shape = 'u8[131072]{0}', space=vmem, size = 0x20000, scoped, tag = 'input window, operand 1']
    #allocation7 [shape = 's32[2]{0}', space=sflag, size = 0x8, scoped, tag = 'scoped memory for tpu_custom_call.1']
    #allocation8 [shape = 'u8[512]{0}', space=vmem, size = 0x400, scoped, tag = 'input window, operand 2, single buffered']
    #allocation9 [shape = 'u8[65536]{0}', space=vmem, size = 0x10000, scoped, tag = 'output window, operand 0, single buffered']
    %8 = vsyncpa [#allocation4], 0
    %s9 = scalar_lea.sflag [#allocation4], 1
    %10 = vsyncpa %s9, 0
    %11 = vsyncpa [#allocation7], 0
    %s12 = scalar_lea.sflag [#allocation7], 1
    %13 = vsyncpa %s12, 0
    %14 = vsyncpa [#allocation5], 0
    loop: start=0, step=1, limit=4
    $region2: #{tpu_custom_call.1} parent=1 // loop_pre_header
      _
    $region3: #{tpu_custom_call.1} parent=1 // loop_header
      %s16 = sphi 0, %s20
      %p17 = scmp.ge.s32.totalorder %s16, 4
      %s23 = sphi 0, %s42
      %s24 = sphi 0, %s38
      %s25 = sphi 0, %s34
      %s26 = sphi 0, %s23
      %s27 = sphi 0, %s24
      %s28 = sphi 0, %s25
      %s29 = sphi 0, %s26
      %s30 = sphi 0, %s27
      %s31 = sphi 0, %s28
      %s47 = sphi 0, %s49
      %s50 = sphi 0, %s47
      %s51 = sphi 0, %s50
      %s67 = sphi 0, %s51
      %s75 = sphi 0, %s77
      %s78 = sphi 0, %s75
      %s79 = sphi 0, %s78
      %s95 = sphi 0, %s79
      %s101 = sphi 0, %s103
      %s104 = sphi 0, %s101
      %s105 = sphi 0, %s104
      %s121 = sphi 0, %s105
      %s129 = sphi 0, %s131
      %s132 = sphi 0, %s129
      %s133 = sphi 0, %s132
      %s149 = sphi 0, %s133
    $region4: #{tpu_custom_call.1} parent=1 // loop_header_branch
      %19 = sbr.rel (%p17) target = $region8
    $region5: #{tpu_custom_call.1} parent=1 // loop_body
      %s21 = ssub.s32 %s16, 1
      %s22 = ssub.s32 %s16, 2
      %s32 = sadd.s32 1, %s25
      %p33 = scmp.ge.s32.totalorder %s32, 2
      %s34 = scalar_select %p33, 0, %s32
      %s35 = sadd.s32 1, %s24
      %s36 = scalar_select %p33, %s35, %s24
      %p37 = scmp.ge.s32.totalorder %s36, 1
      %s38 = scalar_select %p37, 0, %s36
      %s39 = sadd.s32 1, %s23
      %s40 = scalar_select %p37, %s39, %s23
      %p41 = scmp.ge.s32.totalorder %s40, 1
      %s42 = scalar_select %p41, 0, %s40
      %s43 = ssub.s32 %s23, %s42
      %s44 = ssub.s32 %s25, %s34
      %s45 = sor.u32 %s43, %s44
      %p46 = scmp.eq.s32.totalorder %s45, 0
      %s48 = sadd.s32 %s47, 1
      %s49 = scalar_select %p46, %s47, %s48
      %p52 = pneg %p46
      %p53 = scmp.eq.s32.totalorder %s16, 1
      %p54 = por %p52, %p53
      %p55 = scmp.ne.s32.totalorder %s47, %s50
      %p56 = scmp.eq.s32.totalorder %s16, 0
      %p57 = por %p55, %p56
      %p58 = scmp.ne.s32.totalorder %s47, %s50
      %p59 = scmp.eq.s32.totalorder %s21, 1
      %p60 = por %p58, %p59
      %p61 = scmp.ne.s32.totalorder %s50, %s51
      %p62 = scmp.eq.s32.totalorder %s21, 0
      %p63 = por %p61, %p62
      %p64 = scmp.ne.s32.totalorder %s50, %s51
      %p65 = scmp.eq.s32.totalorder %s22, 1
      %p66 = por %p64, %p65
      %p68 = scmp.ne.s32.totalorder %s51, %s67
      %p69 = scmp.eq.s32.totalorder %s22, 0
      %p70 = por %p68, %p69
      %s71 = ssub.s32 %s25, %s34
      %s72 = ssub.s32 %s24, %s38
      %s73 = sor.u32 %s71, %s72
      %p74 = scmp.eq.s32.totalorder %s73, 0
      %s76 = sadd.s32 %s75, 1
      %s77 = scalar_select %p74, %s75, %s76
      %p80 = pneg %p74
      %p81 = scmp.eq.s32.totalorder %s16, 1
      %p82 = por %p80, %p81
      %p83 = scmp.ne.s32.totalorder %s75, %s78
      %p84 = scmp.eq.s32.totalorder %s16, 0
      %p85 = por %p83, %p84
      %p86 = scmp.ne.s32.totalorder %s75, %s78
      %p87 = scmp.eq.s32.totalorder %s21, 1
      %p88 = por %p86, %p87
      %p89 = scmp.ne.s32.totalorder %s78, %s79
      %p90 = scmp.eq.s32.totalorder %s21, 0
      %p91 = por %p89, %p90
      %p92 = scmp.ne.s32.totalorder %s78, %s79
      %p93 = scmp.eq.s32.totalorder %s22, 1
      %p94 = por %p92, %p93
      %p96 = scmp.ne.s32.totalorder %s79, %s95
      %p97 = scmp.eq.s32.totalorder %s22, 0
      %p98 = por %p96, %p97
      %s99 = ssub.s32 %s24, %s38
      %p100 = scmp.eq.s32.totalorder %s99, 0
      %s102 = sadd.s32 %s101, 1
      %s103 = scalar_select %p100, %s101, %s102
      %p106 = pneg %p100
      %p107 = scmp.eq.s32.totalorder %s16, 1
      %p108 = por %p106, %p107
      %p109 = scmp.ne.s32.totalorder %s101, %s104
      %p110 = scmp.eq.s32.totalorder %s16, 0
      %p111 = por %p109, %p110
      %p112 = scmp.ne.s32.totalorder %s101, %s104
      %p113 = scmp.eq.s32.totalorder %s21, 1
      %p114 = por %p112, %p113
      %p115 = scmp.ne.s32.totalorder %s104, %s105
      %p116 = scmp.eq.s32.totalorder %s21, 0
      %p117 = por %p115, %p116
      %p118 = scmp.ne.s32.totalorder %s104, %s105
      %p119 = scmp.eq.s32.totalorder %s22, 1
      %p120 = por %p118, %p119
      %p122 = scmp.ne.s32.totalorder %s105, %s121
      %p123 = scmp.eq.s32.totalorder %s22, 0
      %p124 = por %p122, %p123
      %s125 = ssub.s32 %s23, %s42
      %s126 = ssub.s32 %s24, %s38
      %s127 = sor.u32 %s125, %s126
      %p128 = scmp.eq.s32.totalorder %s127, 0
      %s130 = sadd.s32 %s129, 1
      %s131 = scalar_select %p128, %s129, %s130
      %p134 = pneg %p128
      %p135 = scmp.eq.s32.totalorder %s16, 1
      %p136 = por %p134, %p135
      %p137 = scmp.ne.s32.totalorder %s129, %s132
      %p138 = scmp.eq.s32.totalorder %s16, 0
      %p139 = por %p137, %p138
      %p140 = scmp.ne.s32.totalorder %s129, %s132
      %p141 = scmp.eq.s32.totalorder %s21, 1
      %p142 = por %p140, %p141
      %p143 = scmp.ne.s32.totalorder %s132, %s133
      %p144 = scmp.eq.s32.totalorder %s21, 0
      %p145 = por %p143, %p144
      %p146 = scmp.ne.s32.totalorder %s132, %s133
      %p147 = scmp.eq.s32.totalorder %s22, 1
      %p148 = por %p146, %p147
      %p150 = scmp.ne.s32.totalorder %s133, %s149
      %p151 = scmp.eq.s32.totalorder %s22, 0
      %p152 = por %p150, %p151
      %p153 = scmp.le.s32.totalorder 1, %s16
      %p154 = scmp.lt.s32.totalorder %s16, 3
      %p155 = pnand %p153, %p154
      %p156 = pneg %p155
      // Predicated region
      $region9: #{tpu_custom_call.1} parent=5 // pred_check
        _
      $region10: #{tpu_custom_call.1} parent=5 // pred_check_branch
        %158 = sbr.rel (%p155) target = $region12
      $region11: #{tpu_custom_call.1} parent=5 // pred_region
        %s159 = ssub.s32 %s16, 1
        // Predicated region
        $region13: #{tpu_custom_call.1} parent=11 // pred_check
          %p160 = pneg %p117
        $region14: #{tpu_custom_call.1} parent=11 // pred_check_branch
          %162 = sbr.rel (%p160) target = $region16
        $region15: #{tpu_custom_call.1} parent=11 // pred_region
          %s164 = ssub.s32 16, 16
          %165 = vsyncadd [#allocation7], %s164
          %s166 = smul.addr %s27, 16
          %s167 = scalar_lea.hbm %s2, %s166
          %s169 = sshll.u32 [#allocation8], 4
          %s170 = int_to_ptr.vmem [resolvable:$true] %s169
          %172 = dma.hbm_to_vmem [thread:$0]  %s167, 16, %s170, [#allocation7]
        $region16: #{tpu_custom_call.1} parent=11 // pred_fallthru
          _
      $region12: #{tpu_custom_call.1} parent=5 // pred_fallthru
        _
      %p173 = scmp.lt.s32.totalorder %s16, 2
      // Predicated region
      $region17: #{tpu_custom_call.1} parent=5 // pred_check
        %p174 = pneg %p173
      $region18: #{tpu_custom_call.1} parent=5 // pred_check_branch
        %176 = sbr.rel (%p174) target = $region20
      $region19: #{tpu_custom_call.1} parent=5 // pred_region
        // Predicated region
        $region21: #{tpu_custom_call.1} parent=19 // pred_check
          %p177 = pneg %p57
        $region22: #{tpu_custom_call.1} parent=19 // pred_check_branch
          %179 = sbr.rel (%p177) target = $region24
        $region23: #{tpu_custom_call.1} parent=19 // pred_region
          %s180 = sand.u32 %s47, 1
          %s181 = scalar_lea.sflag [#allocation4], %s180
          %s182 = sand.u32 %s47, 1
          %s183 = smul.addr %s182, 128
          %s184 = scalar_lea.vmem [#allocation3], %s183
          %s185 = smul.u32 16, %s23
          %s187 = ssub.s32 2048, 2048
          %188 = vsyncadd %s181, %s187
          %s189 = smul.addr %s185, 2
          %s190 = sadd.s32 %s25, %s189
          %s191 = smul.addr %s190, 128
          %s192 = scalar_lea.hbm %s0, %s191
          %s193 = sshll.u32 %s184, 4
          %s194 = int_to_ptr.vmem [resolvable:$true] %s193
          %199 = dma.hbm_to_vmem [thread:$0]  %s192, 2048, %s194, %s181, 256, 128, 8
        $region24: #{tpu_custom_call.1} parent=19 // pred_fallthru
          _
        // Predicated region
        $region25: #{tpu_custom_call.1} parent=19 // pred_check
          %p200 = pneg %p85
        $region26: #{tpu_custom_call.1} parent=19 // pred_check_branch
          %202 = sbr.rel (%p200) target = $region28
        $region27: #{tpu_custom_call.1} parent=19 // pred_region
          %s203 = sand.u32 %s16, 1
          %s204 = scalar_lea.sflag [#allocation7], %s203
          %s205 = sand.u32 %s75, 1
          %s206 = smul.addr %s205, 128
          %s207 = scalar_lea.vmem [#allocation6], %s206
          %s208 = smul.u32 16, %s25
          %s210 = ssub.s32 2048, 2048
          %211 = vsyncadd %s204, %s210
          %s212 = sadd.s32 %s24, %s208
          %s213 = smul.addr %s212, 128
          %s214 = scalar_lea.hbm %s1, %s213
          %s215 = sshll.u32 %s207, 4
          %s216 = int_to_ptr.vmem [resolvable:$true] %s215
          %221 = dma.hbm_to_vmem [thread:$0]  %s214, 2048, %s216, %s204, 128, 128, 8
        $region28: #{tpu_custom_call.1} parent=19 // pred_fallthru
          _
      $region20: #{tpu_custom_call.1} parent=5 // pred_fallthru
        _
      %p222 = scmp.le.s32.totalorder 1, %s16
      %p223 = scmp.lt.s32.totalorder %s16, 3
      %p224 = pnand %p222, %p223
      %p225 = pneg %p224
      // Predicated region
      $region29: #{tpu_custom_call.1} parent=5 // pred_check
        _
      $region30: #{tpu_custom_call.1} parent=5 // pred_check_branch
        %227 = sbr.rel (%p224) target = $region32
      $region31: #{tpu_custom_call.1} parent=5 // pred_region
        %s228 = ssub.s32 %s16, 1
        %s229 = sand.u32 %s50, 1
        %s230 = scalar_lea.sflag [#allocation4], %s229
        %s231 = sand.u32 %s50, 1
        %s232 = smul.addr %s231, 128
        %s233 = scalar_lea.vmem [#allocation3], %s232
        // Predicated region
        $region33: #{tpu_custom_call.1} parent=31 // pred_check
          %p234 = pneg %p63
        $region34: #{tpu_custom_call.1} parent=31 // pred_check_branch
          %236 = sbr.rel (%p234) target = $region36
        $region35: #{tpu_custom_call.1} parent=31 // pred_region
          %237 = dma.done %s230, 2048
        $region36: #{tpu_custom_call.1} parent=31 // pred_fallthru
          _
        %s238 = sand.u32 %s21, 1
        %s239 = scalar_lea.sflag [#allocation7], %s238
        %s240 = sand.u32 %s78, 1
        %s241 = smul.addr %s240, 128
        %s242 = scalar_lea.vmem [#allocation6], %s241
        // Predicated region
        $region37: #{tpu_custom_call.1} parent=31 // pred_check
          %p243 = pneg %p91
        $region38: #{tpu_custom_call.1} parent=31 // pred_check_branch
          %245 = sbr.rel (%p243) target = $region40
        $region39: #{tpu_custom_call.1} parent=31 // pred_region
          %246 = dma.done %s239, 2048
        $region40: #{tpu_custom_call.1} parent=31 // pred_fallthru
          _
        // Predicated region
        $region41: #{tpu_custom_call.1} parent=31 // pred_check
          %p247 = pneg %p117
        $region42: #{tpu_custom_call.1} parent=31 // pred_check_branch
          %249 = sbr.rel (%p247) target = $region44
        $region43: #{tpu_custom_call.1} parent=31 // pred_region
          %250 = dma.done [#allocation7], 16
        $region44: #{tpu_custom_call.1} parent=31 // pred_fallthru
          _
        %s251 = sand.u32 %s50, 1
        %s252 = scalar_lea.sflag [#allocation4], %s251
        %s253 = sand.u32 %s50, 1
        %s254 = smul.addr %s253, 128
        %s255 = scalar_lea.vmem [#allocation3], %s254
        %p256 = pneg %p63
        %p257 = pneg %p60
        %s258 = sand.u32 %s21, 1
        %s259 = scalar_lea.sflag [#allocation7], %s258
        %s260 = sand.u32 %s78, 1
        %s261 = smul.addr %s260, 128
        %s262 = scalar_lea.vmem [#allocation6], %s261
        %p263 = pneg %p91
        %p264 = pneg %p88
        %p265 = pneg %p117
        %p266 = pneg %p114
        %p267 = pneg %p145
        %p268 = pneg %p142
        %s269 = smul.u32 16, %s26
        %s270 = smul.u32 16, %s28
        %s271 = smul.u32 16, %s26
        %p272 = scmp.eq.s32.totalorder %s28, 0
        // Predicated region
        $region45: #{tpu_custom_call.1} parent=31 // pred_check
          %p273 = pneg %p272
        $region46: #{tpu_custom_call.1} parent=31 // pred_check_branch
          %275 = sbr.rel (%p273) target = $region48
        $region47: #{tpu_custom_call.1} parent=31 // pred_region
          %276 = vst [vmem:[#allocation2] sm:$0xff] 0.0
          %277 = vst [vmem:[#allocation2 + $0x8] sm:$0xff] 0.0
          %278 = vst [vmem:[#allocation2 + $0x10] sm:$0xff] 0.0
          %279 = vst [vmem:[#allocation2 + $0x18] sm:$0xff] 0.0
          %280 = vst [vmem:[#allocation2 + $0x20] sm:$0xff] 0.0
          %281 = vst [vmem:[#allocation2 + $0x28] sm:$0xff] 0.0
          %282 = vst [vmem:[#allocation2 + $0x30] sm:$0xff] 0.0
          %283 = vst [vmem:[#allocation2 + $0x38] sm:$0xff] 0.0
          %284 = vst [vmem:[#allocation2 + $0x40] sm:$0xff] 0.0
          %285 = vst [vmem:[#allocation2 + $0x48] sm:$0xff] 0.0
          %286 = vst [vmem:[#allocation2 + $0x50] sm:$0xff] 0.0
          %287 = vst [vmem:[#allocation2 + $0x58] sm:$0xff] 0.0
          %288 = vst [vmem:[#allocation2 + $0x60] sm:$0xff] 0.0
          %289 = vst [vmem:[#allocation2 + $0x68] sm:$0xff] 0.0
          %290 = vst [vmem:[#allocation2 + $0x70] sm:$0xff] 0.0
          %291 = vst [vmem:[#allocation2 + $0x78] sm:$0xff] 0.0
        $region48: #{tpu_custom_call.1} parent=31 // pred_fallthru
          _
        %v292 = vld [vmem:[#allocation2] sm:$0xff]
        %v293 = vld [vmem:[#allocation2 + $0x8] sm:$0xff]
        %v294 = vld [vmem:[#allocation2 + $0x10] sm:$0xff]
        %v295 = vld [vmem:[#allocation2 + $0x18] sm:$0xff]
        %v296 = vld [vmem:[#allocation2 + $0x20] sm:$0xff]
        %v297 = vld [vmem:[#allocation2 + $0x28] sm:$0xff]
        %v298 = vld [vmem:[#allocation2 + $0x30] sm:$0xff]
        %v299 = vld [vmem:[#allocation2 + $0x38] sm:$0xff]
        %v300 = vld [vmem:[#allocation2 + $0x40] sm:$0xff]
        %v301 = vld [vmem:[#allocation2 + $0x48] sm:$0xff]
        %v302 = vld [vmem:[#allocation2 + $0x50] sm:$0xff]
        %v303 = vld [vmem:[#allocation2 + $0x58] sm:$0xff]
        %v304 = vld [vmem:[#allocation2 + $0x60] sm:$0xff]
        %v305 = vld [vmem:[#allocation2 + $0x68] sm:$0xff]
        %v306 = vld [vmem:[#allocation2 + $0x70] sm:$0xff]
        %v307 = vld [vmem:[#allocation2 + $0x78] sm:$0xff]
        %v308 = vld [vmem:[%s233] sm:$0xff]
        %v309 = vld [vmem:[%s233 + $0x8] sm:$0xff]
        %v310 = vld [vmem:[%s233 + $0x10] sm:$0xff]
        %v311 = vld [vmem:[%s233 + $0x18] sm:$0xff]
        %v312 = vld [vmem:[%s233 + $0x20] sm:$0xff]
        %v313 = vld [vmem:[%s233 + $0x28] sm:$0xff]
        %v314 = vld [vmem:[%s233 + $0x30] sm:$0xff]
        %v315 = vld [vmem:[%s233 + $0x38] sm:$0xff]
        %v316 = vld [vmem:[%s233 + $0x40] sm:$0xff]
        %v317 = vld [vmem:[%s233 + $0x48] sm:$0xff]
        %v318 = vld [vmem:[%s233 + $0x50] sm:$0xff]
        %v319 = vld [vmem:[%s233 + $0x58] sm:$0xff]
        %v320 = vld [vmem:[%s233 + $0x60] sm:$0xff]
        %v321 = vld [vmem:[%s233 + $0x68] sm:$0xff]
        %v322 = vld [vmem:[%s233 + $0x70] sm:$0xff]
        %v323 = vld [vmem:[%s233 + $0x78] sm:$0xff]
        %v324 = vld [vmem:[%s242] sm:$0xff]
        %v325 = vld [vmem:[%s242 + $0x8] sm:$0xff]
        %v326 = vld [vmem:[%s242 + $0x10] sm:$0xff]
        %v327 = vld [vmem:[%s242 + $0x18] sm:$0xff]
        %v328 = vld [vmem:[%s242 + $0x20] sm:$0xff]
        %v329 = vld [vmem:[%s242 + $0x28] sm:$0xff]
        %v330 = vld [vmem:[%s242 + $0x30] sm:$0xff]
        %v331 = vld [vmem:[%s242 + $0x38] sm:$0xff]
        %v332 = vld [vmem:[%s242 + $0x40] sm:$0xff]
        %v333 = vld [vmem:[%s242 + $0x48] sm:$0xff]
        %v334 = vld [vmem:[%s242 + $0x50] sm:$0xff]
        %v335 = vld [vmem:[%s242 + $0x58] sm:$0xff]
        %v336 = vld [vmem:[%s242 + $0x60] sm:$0xff]
        %v337 = vld [vmem:[%s242 + $0x68] sm:$0xff]
        %v338 = vld [vmem:[%s242 + $0x70] sm:$0xff]
        %v339 = vld [vmem:[%s242 + $0x78] sm:$0xff]
        %340 = vmatprep.subr.mxu0 0.0
        %341 = vmatpush1.msra.mxu0 %v324
        %342 = vmatprep.subr.mxu0 0.0
        %343 = vmatpush1.msra.mxu0 %v325
        %344 = vmatprep.subr.mxu0 0.0
        %345 = vmatpush1.msra.mxu0 %v326
        %346 = vmatprep.subr.mxu0 0.0
        %347 = vmatpush1.msra.mxu0 %v327
        %348 = vmatprep.subr.mxu0 0.0
        %349 = vmatpush1.msra.mxu0 %v328
        %350 = vmatprep.subr.mxu0 0.0
        %351 = vmatpush1.msra.mxu0 %v329
        %352 = vmatprep.subr.mxu0 0.0
        %353 = vmatpush1.msra.mxu0 %v330
        %354 = vmatprep.subr.mxu0 0.0
        %355 = vmatpush1.msra.mxu0 %v331
        %356 = vmatprep.subr.mxu0 0.0
        %357 = vmatpush1.msra.mxu0 %v332
        %358 = vmatprep.subr.mxu0 0.0
        %359 = vmatpush1.msra.mxu0 %v333
        %360 = vmatprep.subr.mxu0 0.0
        %361 = vmatpush1.msra.mxu0 %v334
        %362 = vmatprep.subr.mxu0 0.0
        %363 = vmatpush1.msra.mxu0 %v335
        %364 = vmatprep.subr.mxu0 0.0
        %365 = vmatpush1.msra.mxu0 %v336
        %366 = vmatprep.subr.mxu0 0.0
        %367 = vmatpush1.msra.mxu0 %v337
        %368 = vmatprep.subr.mxu0 0.0
        %369 = vmatpush1.msra.mxu0 %v338
        %370 = vmatprep.subr.mxu0 0.0
        %371 = vmatpush1.msra.mxu0 %v339
        %372 = vmatprep.subr.mxu0 0.0
        %373 = vmatpush1.msra.mxu0 0.0
        %374 = vmatprep.subr.mxu0 0.0
        %375 = vmatpush1.msra.mxu0 0.0
        %376 = vmatprep.subr.mxu0 0.0
        %377 = vmatpush1.msra.mxu0 0.0
        %378 = vmatprep.subr.mxu0 0.0
        %379 = vmatpush1.msra.mxu0 0.0
        %380 = vmatprep.subr.mxu0 0.0
        %381 = vmatpush1.msra.mxu0 0.0
        %382 = vmatprep.subr.mxu0 0.0
        %383 = vmatpush1.msra.mxu0 0.0
        %384 = vmatprep.subr.mxu0 0.0
        %385 = vmatpush1.msra.mxu0 0.0
        %386 = vmatprep.subr.mxu0 0.0
        %387 = vmatpush1.msra.mxu0 0.0
        %388 = vmatprep.subr.mxu0 0.0
        %389 = vmatpush1.msra.mxu0 0.0
        %390 = vmatprep.subr.mxu0 0.0
        %391 = vmatpush1.msra.mxu0 0.0
        %392 = vmatprep.subr.mxu0 0.0
        %393 = vmatpush1.msra.mxu0 0.0
        %394 = vmatprep.subr.mxu0 0.0
        %395 = vmatpush1.msra.mxu0 0.0
        %396 = vmatprep.subr.mxu0 0.0
        %397 = vmatpush1.msra.mxu0 0.0
        %398 = vmatprep.subr.mxu0 0.0
        %399 = vmatpush1.msra.mxu0 0.0
        %400 = vmatprep.subr.mxu0 0.0
        %401 = vmatpush1.msra.mxu0 0.0
        %402 = vmatprep.subr.mxu0 0.0
        %403 = vmatpush1.msra.mxu0 0.0
        %404 = vmatprep.mubr.f32.mxu0 0.0
        %405 = vmatmul.mubr.f32.gmra.mrb[0].mxu0 %v308
        %v406 = vpop.f32.mrb[0].mxu0
        %v407 = vadd.f32 0.0, %v406
        %v408 = vpop.f32.mrb[0].mxu0
        %409 = vmatprep.mubr.f32.mxu0 0.0
        %410 = vmatmul.mubr.f32.gmra.mrb[0].mxu0 %v309
        %v411 = vpop.f32.mrb[0].mxu0
        %v412 = vadd.f32 0.0, %v411
        %v413 = vpop.f32.mrb[0].mxu0
        %414 = vmatprep.mubr.f32.mxu0 0.0
        %415 = vmatmul.mubr.f32.gmra.mrb[0].mxu0 %v310
        %v416 = vpop.f32.mrb[0].mxu0
        %v417 = vadd.f32 0.0, %v416
        %v418 = vpop.f32.mrb[0].mxu0
        %419 = vmatprep.mubr.f32.mxu0 0.0
        %420 = vmatmul.mubr.f32.gmra.mrb[0].mxu0 %v311
        %v421 = vpop.f32.mrb[0].mxu0
        %v422 = vadd.f32 0.0, %v421
        %v423 = vpop.f32.mrb[0].mxu0
        %424 = vmatprep.mubr.f32.mxu0 0.0
        %425 = vmatmul.mubr.f32.gmra.mrb[0].mxu0 %v312
        %v426 = vpop.f32.mrb[0].mxu0
        %v427 = vadd.f32 0.0, %v426
        %v428 = vpop.f32.mrb[0].mxu0
        %429 = vmatprep.mubr.f32.mxu0 0.0
        %430 = vmatmul.mubr.f32.gmra.mrb[0].mxu0 %v313
        %v431 = vpop.f32.mrb[0].mxu0
        %v432 = vadd.f32 0.0, %v431
        %v433 = vpop.f32.mrb[0].mxu0
        %434 = vmatprep.mubr.f32.mxu0 0.0
        %435 = vmatmul.mubr.f32.gmra.mrb[0].mxu0 %v314
        %v436 = vpop.f32.mrb[0].mxu0
        %v437 = vadd.f32 0.0, %v436
        %v438 = vpop.f32.mrb[0].mxu0
        %439 = vmatprep.mubr.f32.mxu0 0.0
        %440 = vmatmul.mubr.f32.gmra.mrb[0].mxu0 %v315
        %v441 = vpop.f32.mrb[0].mxu0
        %v442 = vadd.f32 0.0, %v441
        %v443 = vpop.f32.mrb[0].mxu0
        %444 = vmatprep.mubr.f32.mxu0 0.0
        %445 = vmatmul.mubr.f32.gmra.mrb[0].mxu0 %v316
        %v446 = vpop.f32.mrb[0].mxu0
        %v447 = vadd.f32 0.0, %v446
        %v448 = vpop.f32.mrb[0].mxu0
        %449 = vmatprep.mubr.f32.mxu0 0.0
        %450 = vmatmul.mubr.f32.gmra.mrb[0].mxu0 %v317
        %v451 = vpop.f32.mrb[0].mxu0
        %v452 = vadd.f32 0.0, %v451
        %v453 = vpop.f32.mrb[0].mxu0
        %454 = vmatprep.mubr.f32.mxu0 0.0
        %455 = vmatmul.mubr.f32.gmra.mrb[0].mxu0 %v318
        %v456 = vpop.f32.mrb[0].mxu0
        %v457 = vadd.f32 0.0, %v456
        %v458 = vpop.f32.mrb[0].mxu0
        %459 = vmatprep.mubr.f32.mxu0 0.0
        %460 = vmatmul.mubr.f32.gmra.mrb[0].mxu0 %v319
        %v461 = vpop.f32.mrb[0].mxu0
        %v462 = vadd.f32 0.0, %v461
        %v463 = vpop.f32.mrb[0].mxu0
        %464 = vmatprep.mubr.f32.mxu0 0.0
        %465 = vmatmul.mubr.f32.gmra.mrb[0].mxu0 %v320
        %v466 = vpop.f32.mrb[0].mxu0
        %v467 = vadd.f32 0.0, %v466
        %v468 = vpop.f32.mrb[0].mxu0
        %469 = vmatprep.mubr.f32.mxu0 0.0
        %470 = vmatmul.mubr.f32.gmra.mrb[0].mxu0 %v321
        %v471 = vpop.f32.mrb[0].mxu0
        %v472 = vadd.f32 0.0, %v471
        %v473 = vpop.f32.mrb[0].mxu0
        %474 = vmatprep.mubr.f32.mxu0 0.0
        %475 = vmatmul.mubr.f32.gmra.mrb[0].mxu0 %v322
        %v476 = vpop.f32.mrb[0].mxu0
        %v477 = vadd.f32 0.0, %v476
        %v478 = vpop.f32.mrb[0].mxu0
        %479 = vmatprep.mubr.f32.mxu0 0.0
        %480 = vmatmul.mubr.f32.gmra.mrb[0].mxu0 %v323
        %v481 = vpop.f32.mrb[0].mxu0
        %v482 = vadd.f32 0.0, %v481
        %v483 = vpop.f32.mrb[0].mxu0
        %484 = vdwg.mxu0
        %v485 = vadd.f32 %v292, %v407
        %v486 = vadd.f32 %v293, %v412
        %v487 = vadd.f32 %v294, %v417
        %v488 = vadd.f32 %v295, %v422
        %v489 = vadd.f32 %v296, %v427
        %v490 = vadd.f32 %v297, %v432
        %v491 = vadd.f32 %v298, %v437
        %v492 = vadd.f32 %v299, %v442
        %v493 = vadd.f32 %v300, %v447
        %v494 = vadd.f32 %v301, %v452
        %v495 = vadd.f32 %v302, %v457
        %v496 = vadd.f32 %v303, %v462
        %v497 = vadd.f32 %v304, %v467
        %v498 = vadd.f32 %v305, %v472
        %v499 = vadd.f32 %v306, %v477
        %v500 = vadd.f32 %v307, %v482
        %501 = vst [vmem:[#allocation2] sm:$0xff] %v485
        %502 = vst [vmem:[#allocation2 + $0x8] sm:$0xff] %v486
        %503 = vst [vmem:[#allocation2 + $0x10] sm:$0xff] %v487
        %504 = vst [vmem:[#allocation2 + $0x18] sm:$0xff] %v488
        %505 = vst [vmem:[#allocation2 + $0x20] sm:$0xff] %v489
        %506 = vst [vmem:[#allocation2 + $0x28] sm:$0xff] %v490
        %507 = vst [vmem:[#allocation2 + $0x30] sm:$0xff] %v491
        %508 = vst [vmem:[#allocation2 + $0x38] sm:$0xff] %v492
        %509 = vst [vmem:[#allocation2 + $0x40] sm:$0xff] %v493
        %510 = vst [vmem:[#allocation2 + $0x48] sm:$0xff] %v494
        %511 = vst [vmem:[#allocation2 + $0x50] sm:$0xff] %v495
        %512 = vst [vmem:[#allocation2 + $0x58] sm:$0xff] %v496
        %513 = vst [vmem:[#allocation2 + $0x60] sm:$0xff] %v497
        %514 = vst [vmem:[#allocation2 + $0x68] sm:$0xff] %v498
        %515 = vst [vmem:[#allocation2 + $0x70] sm:$0xff] %v499
        %516 = vst [vmem:[#allocation2 + $0x78] sm:$0xff] %v500
        %p517 = scmp.eq.s32.totalorder %s28, 1
        // Predicated region
        $region49: #{tpu_custom_call.1} parent=31 // pred_check
          %p518 = pneg %p517
        $region50: #{tpu_custom_call.1} parent=31 // pred_check_branch
          %520 = sbr.rel (%p518) target = $region52
        $region51: #{tpu_custom_call.1} parent=31 // pred_region
          %v521 = vld [vmem:[#allocation2] sm:$0xff]
          %v522 = vld [vmem:[#allocation2 + $0x8] sm:$0xff]
          %v523 = vld [vmem:[#allocation2 + $0x10] sm:$0xff]
          %v524 = vld [vmem:[#allocation2 + $0x18] sm:$0xff]
          %v525 = vld [vmem:[#allocation2 + $0x20] sm:$0xff]
          %v526 = vld [vmem:[#allocation2 + $0x28] sm:$0xff]
          %v527 = vld [vmem:[#allocation2 + $0x30] sm:$0xff]
          %v528 = vld [vmem:[#allocation2 + $0x38] sm:$0xff]
          %v529 = vld [vmem:[#allocation2 + $0x40] sm:$0xff]
          %v530 = vld [vmem:[#allocation2 + $0x48] sm:$0xff]
          %v531 = vld [vmem:[#allocation2 + $0x50] sm:$0xff]
          %v532 = vld [vmem:[#allocation2 + $0x58] sm:$0xff]
          %v533 = vld [vmem:[#allocation2 + $0x60] sm:$0xff]
          %v534 = vld [vmem:[#allocation2 + $0x68] sm:$0xff]
          %v535 = vld [vmem:[#allocation2 + $0x70] sm:$0xff]
          %v536 = vld [vmem:[#allocation2 + $0x78] sm:$0xff]
          %v537 = vld [vmem:[#allocation8] sm:$0x1]
          %v539 = vlaneseq
          %v540 = vshrl.u32 %v539, 7
          %v541 = vsub.s32 0, %v540
          %v542 = vrot.slane %v537, %v541
          %v544 = vadd.f32 %v521, %v542
          %v545 = vadd.f32 %v522, %v542
          %v546 = vadd.f32 %v523, %v542
          %v547 = vadd.f32 %v524, %v542
          %v548 = vadd.f32 %v525, %v542
          %v549 = vadd.f32 %v526, %v542
          %v550 = vadd.f32 %v527, %v542
          %v551 = vadd.f32 %v528, %v542
          %v552 = vadd.f32 %v529, %v542
          %v553 = vadd.f32 %v530, %v542
          %v554 = vadd.f32 %v531, %v542
          %v555 = vadd.f32 %v532, %v542
          %v556 = vadd.f32 %v533, %v542
          %v557 = vadd.f32 %v534, %v542
          %v558 = vadd.f32 %v535, %v542
          %v559 = vadd.f32 %v536, %v542
          %560 = vst [vmem:[#allocation9] sm:$0xff] %v544
          %561 = vst [vmem:[#allocation9 + $0x8] sm:$0xff] %v545
          %562 = vst [vmem:[#allocation9 + $0x10] sm:$0xff] %v546
          %563 = vst [vmem:[#allocation9 + $0x18] sm:$0xff] %v547
          %564 = vst [vmem:[#allocation9 + $0x20] sm:$0xff] %v548
          %565 = vst [vmem:[#allocation9 + $0x28] sm:$0xff] %v549
          %566 = vst [vmem:[#allocation9 + $0x30] sm:$0xff] %v550
          %567 = vst [vmem:[#allocation9 + $0x38] sm:$0xff] %v551
          %568 = vst [vmem:[#allocation9 + $0x40] sm:$0xff] %v552
          %569 = vst [vmem:[#allocation9 + $0x48] sm:$0xff] %v553
          %570 = vst [vmem:[#allocation9 + $0x50] sm:$0xff] %v554
          %571 = vst [vmem:[#allocation9 + $0x58] sm:$0xff] %v555
          %572 = vst [vmem:[#allocation9 + $0x60] sm:$0xff] %v556
          %573 = vst [vmem:[#allocation9 + $0x68] sm:$0xff] %v557
          %574 = vst [vmem:[#allocation9 + $0x70] sm:$0xff] %v558
          %575 = vst [vmem:[#allocation9 + $0x78] sm:$0xff] %v559
        $region52: #{tpu_custom_call.1} parent=31 // pred_fallthru
          _
        // Predicated region
        $region53: #{tpu_custom_call.1} parent=31 // pred_check
          %p576 = pneg %p142
        $region54: #{tpu_custom_call.1} parent=31 // pred_check_branch
          %578 = sbr.rel (%p576) target = $region56
        $region55: #{tpu_custom_call.1} parent=31 // pred_region
          %s579 = smul.u32 16, %s26
          %s581 = ssub.s32 2048, 2048
          %582 = vsyncadd [#allocation5], %s581
          %s583 = sadd.s32 %s27, %s579
          %s584 = smul.addr %s583, 128
          %s585 = scalar_lea.hbm %s3, %s584
          %s586 = sshll.u32 [#allocation9], 4
          %s587 = int_to_ptr.vmem [resolvable:$true] %s586
          %592 = dma.vmem_to_hbm [thread:$0]  %s587, 2048, %s585, [#allocation5], 128, 128, 8
        $region56: #{tpu_custom_call.1} parent=31 // pred_fallthru
          _
        // Predicated region
        $region57: #{tpu_custom_call.1} parent=31 // pred_check
          %p593 = pneg %p142
        $region58: #{tpu_custom_call.1} parent=31 // pred_check_branch
          %595 = sbr.rel (%p593) target = $region60
        $region59: #{tpu_custom_call.1} parent=31 // pred_region
          %596 = dma.done [#allocation5], 2048
        $region60: #{tpu_custom_call.1} parent=31 // pred_fallthru
          _
      $region32: #{tpu_custom_call.1} parent=5 // pred_fallthru
        _
      %p597 = scmp.le.s32.totalorder 2, %s16
      // Predicated region
      $region61: #{tpu_custom_call.1} parent=5 // pred_check
        %p598 = pneg %p597
      $region62: #{tpu_custom_call.1} parent=5 // pred_check_branch
        %600 = sbr.rel (%p598) target = $region64
      $region63: #{tpu_custom_call.1} parent=5 // pred_region
        %s601 = ssub.s32 %s16, 2
      $region64: #{tpu_custom_call.1} parent=5 // pred_fallthru
        _
    $region6: #{tpu_custom_call.1} parent=1 // loop_footer
      %s20 = sadd.s32 1, %s16
    $region7: #{tpu_custom_call.1} parent=1 // loop_footer_branch
      %15 = sbr.rel target = $region3
    $region8: #{tpu_custom_call.1} parent=1 // loop_exit
      _
    %602 = vsyncpa [#allocation4], 1
    %s603 = scalar_lea.sflag [#allocation4], 1
    %604 = vsyncpa %s603, 1
    %605 = vsyncpa [#allocation7], 1
    %s606 = scalar_lea.sflag [#allocation7], 1
    %607 = vsyncpa %s606, 1
    %608 = vsyncpa [#allocation5], 1
    %s609 = scalar_lea.sflag [#allocation5], 1
    %610 = vsyncpa %s609, 1

</llo_original>
